<compile_context>
chip_gen: v7x
topology: tpu7x:2x2x1
jax: 0.10.0
libtpu: 0.0.40
codegen_flags: <defaults>
</compile_context>

<pallas_src>
import jax
import jax.numpy as jnp
from jax.experimental import pallas as pl
from jax.experimental.pallas import tpu as pltpu

ALPHA = 30.0        # smooth-max sharpness (util.sparse_smooth_max in PDP)
EPS = 1e-10
NEG_BIG = -1e30
IDX_SENTINEL = 1 << 30

TV_MAX = 512        # V-tile (rows of graph_mask), multiple of 8
TE_MAX = 2048       # E-tile (reduction axis), multiple of 128; bf16 tile = 2 MiB


def _round_up(x, m):
    return ((x + m - 1) // m) * m


def _pad2(a, rows, cols):
    return jnp.pad(a, ((0, rows - a.shape[0]), (0, cols - a.shape[1])))


# ----------------------------- fused graph_mask kernel ------------------------------
# grid = (nV, nE): V tiles "parallel", E tiles "arbitrary" (trailing reduction).
# acc scratch (tv, 8) carries [num_s, den_s, num_d, den_d, score_raw, ...] across E.

def _fused_graph_kernel(scal_ref, g_ref, surv_ref, prev_ref, emask_ref, msg_ref,
                        w_ref, act_ref, bm_ref, slab_ref, bpart_ref, acc_ref):
    k = pl.program_id(1)

    @pl.when(k == 0)
    def _():
        acc_ref[...] = jnp.zeros_like(acc_ref)

    x = surv_ref[...]                                    # (te, 1) survey column
    m_x = scal_ref[0:1, 0:1]                             # global max(survey)  (1,1)
    m_d = scal_ref[0:1, 1:2]                             # global max(diff)    (1,1)

    # exp stabilised with a *global* max: the e^{-alpha m} factor cancels exactly
    # in the smooth-max ratio, so this is a free overflow fix.
    wx = jnp.exp(ALPHA * (x - m_x))
    d = jnp.abs(prev_ref[...] - x) * emask_ref[...]
    wd = jnp.exp(ALPHA * (d - m_d))

    # reassociated scorer: (te, M) @ (M, 1), aggregated by graph_mask below.
    s_edge = jnp.dot(msg_ref[...], w_ref[...], preferred_element_type=jnp.float32)

    pad_cols = jnp.zeros((x.shape[0], 3), jnp.float32)
    rhs = jnp.concatenate([x * wx, wx, d * wd, wd, s_edge, pad_cols], axis=1)  # (te, 8)

    g = g_ref[...].astype(jnp.float32)                   # bf16 mask -> f32 accumulate
    acc_ref[...] += jnp.dot(g, rhs, preferred_element_type=jnp.float32)        # (tv, 8)

    @pl.when(k == pl.num_programs(1) - 1)
    def _():
        acc = acc_ref[...]
        act = act_ref[...]                               # (tv, 1) active_variables
        inv_s = pl.reciprocal(acc[:, 1:2] + EPS, approx=True)
        inv_d = pl.reciprocal(acc[:, 3:4] + EPS, approx=True)
        survey_v = acc[:, 0:1] * inv_s * act             # sparse_smooth_max * active
        sumdiff_v = acc[:, 2:3] * inv_d * act
        score = acc[:, 4:5] + scal_ref[0:1, 2:3]         # + scorer bias
        coeff_pre = jnp.abs(score) * act                 # per-batch flags applied later

        zeros4 = jnp.zeros((acc.shape[0], 4), jnp.float32)
        slab_ref[...] = jnp.concatenate(
            [survey_v, sumdiff_v, score, coeff_pre, zeros4], axis=1)           # (tv, 8)

        # per-V-tile partial batch maxima (finished by a tiny XLA max outside).
        bm = bm_ref[...]                                 # (tv, B) f32 0/1
        ms = jnp.max(jnp.where(bm > 0, survey_v, NEG_BIG), axis=0, keepdims=True)
        md = jnp.max(jnp.where(bm > 0, sumdiff_v, NEG_BIG), axis=0, keepdims=True)
        bpart_ref[...] = jnp.concatenate([ms, md], axis=0).reshape(1, 2, bm.shape[1])


def _fused_graph_pass(g_pad, bm_pad, surv_pad, prev_pad, em_pad, msg_pad, act_pad,
                      scorer_w, scorer_b, tv, te):
    f32 = jnp.float32
    Vp, Ep = g_pad.shape
    B = bm_pad.shape[1]
    M = msg_pad.shape[1]
    n_v, n_e = Vp // tv, Ep // te

    # stabilisation maxima + scorer bias, passed as a tiny (1, 8) VMEM operand.
    d_full = jnp.abs(prev_pad - surv_pad) * em_pad
    bias = scorer_b.reshape(-1)[0]
    scal = (jnp.zeros((1, 8), f32)
            .at[0, 0].set(jnp.max(surv_pad))
            .at[0, 1].set(jnp.max(d_full))
            .at[0, 2].set(bias))

    out_shape = (jax.ShapeDtypeStruct((Vp, 8), f32),          # per-variable slab
                 jax.ShapeDtypeStruct((n_v, 2, B), f32))      # per-tile batch maxima

    slab, bpart = pl.pallas_call(
        _fused_graph_kernel,
        grid_spec=pltpu.PrefetchScalarGridSpec(
            num_scalar_prefetch=0,
            grid=(n_v, n_e),
            in_specs=[
                pl.BlockSpec((1, 8), lambda i, k: (0, 0)),          # scalars
                pl.BlockSpec((tv, te), lambda i, k: (i, k)),        # graph_mask (bf16)
                pl.BlockSpec((te, 1), lambda i, k: (k, 0)),         # survey column
                pl.BlockSpec((te, 1), lambda i, k: (k, 0)),         # previous state
                pl.BlockSpec((te, 1), lambda i, k: (k, 0)),         # edge mask
                pl.BlockSpec((te, M), lambda i, k: (k, 0)),         # messages
                pl.BlockSpec((M, 1), lambda i, k: (0, 0)),          # scorer weight
                pl.BlockSpec((tv, 1), lambda i, k: (i, 0)),         # active_variables
                pl.BlockSpec((tv, B), lambda i, k: (i, 0)),         # batch mask
            ],
            out_specs=[
                pl.BlockSpec((tv, 8), lambda i, k: (i, 0)),
                pl.BlockSpec((1, 2, B), lambda i, k: (i, 0, 0)),
            ],
            scratch_shapes=[pltpu.VMEM((tv, 8), jnp.float32)],
        ),
        out_shape=out_shape,
        compiler_params=pltpu.CompilerParams(
            dimension_semantics=("parallel", "arbitrary"),
            vmem_limit_bytes=32 * 1024 * 1024,
        ),
    )(scal, g_pad, surv_pad, prev_pad, em_pad, msg_pad,
      scorer_w.astype(f32), act_pad, bm_pad)
    return slab, bpart


# ------------------------- coeff / norm / argmax (carried) --------------------------
# Single pass over V tiles; running per-batch (max, argmin-index, sums) carried in
# resident (1, B) outputs + a VMEM scratch.

def _coeff_kernel(slab_ref, bm_ref, flags_ref, norm_ref, fsum_ref, idx_ref, max_sc):
    j = pl.program_id(0)
    tv = slab_ref.shape[0]

    @pl.when(j == 0)
    def _():
        norm_ref[...] = jnp.zeros_like(norm_ref)
        fsum_ref[...] = jnp.zeros_like(fsum_ref)
        idx_ref[...] = jnp.full(idx_ref.shape, IDX_SENTINEL, jnp.int32)
        max_sc[...] = jnp.full(max_sc.shape, NEG_BIG, jnp.float32)

    bm = bm_ref[...]                                              # (tv, B) f32 0/1
    coeff_pre = slab_ref[:, 3:4]                                  # |score| * active
    flags_var = jnp.sum(bm * flags_ref[...], axis=1, keepdims=True)   # flags[batch(v)]
    coeff = coeff_pre * flags_var                                 # (tv, 1)

    norm_ref[...] += jnp.sum(bm * coeff, axis=0, keepdims=True)       # per-batch norm
    fsum_ref[...] += jnp.sum(bm * flags_var, axis=0, keepdims=True)   # gate bookkeeping

    masked = jnp.where(bm > 0, coeff, NEG_BIG)                    # (tv, B)
    tile_max = jnp.max(masked, axis=0, keepdims=True)             # (1, B)
    gidx = jax.lax.broadcasted_iota(jnp.int32, masked.shape, 0) + j * tv
    is_max = jnp.logical_and(bm > 0, masked >= tile_max)
    cand = jnp.where(is_max, gidx, IDX_SENTINEL)
    tile_arg = jnp.min(cand, axis=0, keepdims=True)               # (1, B) int32

    run_max = max_sc[...]
    run_idx = idx_ref[...]
    better = tile_max > run_max
    same = tile_max == run_max
    max_sc[...] = jnp.maximum(tile_max, run_max)
    idx_ref[...] = jnp.where(better, tile_arg,
                             jnp.where(same, jnp.minimum(tile_arg, run_idx), run_idx))


def _coeff_pass(slab, bm_pad, flags_row, tv):
    f32 = jnp.float32
    Vp = slab.shape[0]
    B = bm_pad.shape[1]
    n_v = Vp // tv

    out_shape = (jax.ShapeDtypeStruct((1, B), f32),
                 jax.ShapeDtypeStruct((1, B), f32),
                 jax.ShapeDtypeStruct((1, B), jnp.int32))

    norm, fsum, idx = pl.pallas_call(
        _coeff_kernel,
        grid_spec=pltpu.PrefetchScalarGridSpec(
            num_scalar_prefetch=0,
            grid=(n_v,),
            in_specs=[
                pl.BlockSpec((tv, 8), lambda j: (j, 0)),
                pl.BlockSpec((tv, B), lambda j: (j, 0)),
                pl.BlockSpec((1, B), lambda j: (0, 0)),
            ],
            out_specs=[
                pl.BlockSpec((1, B), lambda j: (0, 0)),
                pl.BlockSpec((1, B), lambda j: (0, 0)),
                pl.BlockSpec((1, B), lambda j: (0, 0)),
            ],
            scratch_shapes=[pltpu.VMEM((1, B), jnp.float32)],
        ),
        out_shape=out_shape,
        compiler_params=pltpu.CompilerParams(
            dimension_semantics=("arbitrary",),    # carried per-batch reduction over V
            vmem_limit_bytes=32 * 1024 * 1024,
        ),
    )(slab, bm_pad, flags_row)
    return norm, fsum, idx


# --------------------------------- forward (functional) -----------------------------

def sequential_decimator_forward(message_state, prev_function_state, counters, has_prev,
                                 graph_mask, batch_mask, batch_mask_t, active_variables,
                                 edge_mask, active_mask, scorer_w, scorer_b,
                                 tolerance, t_max):
    """Functional port of SequentialDecimator.forward.

    Returns (message_state, new_prev_function_state, new_counters, new_active_mask,
             assignment, did_decimate).  batch_mask_t is accepted for API parity but is
    no longer needed (dense (B, V) DMAs were eliminated)."""
    f32 = jnp.float32
    msg_f2v = message_state[1]                      # (E, M)
    E, M = msg_f2v.shape
    V = graph_mask.shape[0]
    B = batch_mask.shape[1]
    del batch_mask_t  # unused by the fused kernels

    survey_col = msg_f2v[:, 0:1]
    prev_col = (prev_function_state.reshape(E, 1).astype(f32)
                if has_prev else jnp.zeros((E, 1), f32))
    em_col = edge_mask if edge_mask is not None else jnp.ones((E, 1), f32)

    # ---- tiling / zero-padding (satisfies the (8, 128) BlockSpec rule) ----
    Vp = _round_up(V, 8)
    tv = Vp if Vp <= TV_MAX else TV_MAX
    Vp = _round_up(Vp, tv)
    Ep = _round_up(E, 128)
    te = Ep if Ep <= TE_MAX else TE_MAX
    Ep = _round_up(Ep, te)

    # NOTE: callers should keep graph_mask persistently in bf16; astype is a no-op then.
    g_pad = _pad2(graph_mask.astype(jnp.bfloat16), Vp, Ep)
    bm_pad = _pad2(batch_mask.astype(f32), Vp, B)
    act_pad = _pad2(active_variables.astype(f32), Vp, 1)
    surv_pad = _pad2(survey_col.astype(f32), Ep, 1)
    prev_pad = _pad2(prev_col, Ep, 1)
    em_pad = _pad2(em_col.astype(f32), Ep, 1)
    msg_pad = _pad2(msg_f2v.astype(f32), Ep, M)

    # ---- single fused pass over graph_mask ----
    slab, bpart = _fused_graph_pass(g_pad, bm_pad, surv_pad, prev_pad, em_pad, msg_pad,
                                    act_pad, scorer_w, scorer_b.astype(f32), tv, te)
    survey_b = jnp.max(bpart[:, 0, :], axis=0).reshape(B, 1)      # sparse_max(survey)
    sum_diff_b = jnp.max(bpart[:, 1, :], axis=0).reshape(B, 1)    # sparse_max(sum_diff)

    # ---- active_mask update (survey path) ----
    new_active_mask = active_mask
    if active_mask is not None:
        new_active_mask = jnp.where(survey_b <= EPS, 0.0, active_mask)

    assignment = jnp.zeros((V, 1), f32)
    did_decimate = jnp.array(False)
    new_counters = counters

    # ---- main decimation path ----
    if has_prev:
        active_sum_pos = jnp.sum(active_variables) > 0

        c0 = jnp.where(sum_diff_b < tolerance, 0.0, counters)
        flags = (sum_diff_b < tolerance).astype(f32)
        flags = jnp.where(c0 >= t_max, 1.0, flags)
        c1 = jnp.where(c0 >= t_max, 0.0, c0)

        norm_r, fsum_r, idx_r = _coeff_pass(slab, bm_pad, flags.reshape(1, B), tv)
        norm = norm_r.reshape(B, 1)
        idx = idx_r.reshape(B)

        flags_gate = jnp.sum(fsum_r) > 0        # == mm(batch_mask, flags).sum() > 0
        coeff_gate = jnp.sum(norm_r) > 0        # == coeff.sum() > 0
        gate = jnp.logical_and(active_sum_pos,
                               jnp.logical_and(flags_gate, coeff_gate))

        sel = norm[:, 0] != 0
        if active_mask is not None:
            sel = jnp.logical_and(sel, new_active_mask[:, 0] > 0)
        sel = jnp.logical_and(sel, idx < V)     # guard the "no candidate" sentinel

        score = slab[:V, 2]                     # (V,) includes scorer bias
        sign_at = jnp.sign(score)[jnp.clip(idx, 0, V - 1)]
        vals = jnp.where(jnp.logical_and(sel, gate), sign_at, 0.0)
        write_idx = jnp.where(sel, idx, V)      # out-of-range -> dropped
        assignment = assignment.at[write_idx, 0].set(vals, mode="drop")
        did_decimate = jnp.logical_and(gate, jnp.any(sel))
        # TODO(synk): sat_problem.set_variables(assignment) (clause simplification /
        # constraint propagation inside the SAT problem object) has no Pallas
        # equivalent; the assignment vector is returned instead.

        new_counters = jnp.where(active_sum_pos, c1 + 1.0, counters)

    new_prev = msg_f2v[:, 0]
    return message_state, new_prev, new_counters, new_active_mask, assignment, did_decimate


# ----------------------------------------- demo -------------------------------------

if __name__ == "__main__":
    key = jax.random.PRNGKey(0)
    B, V, E, M = 2, 16, 32, 8          # batch, variables, edges, message_dimension
    tolerance, t_max = 1e-3, 10.0
    k = jax.random.split(key, 4)

    # graph mask: each edge incident to exactly one variable (2 edges / variable)
    edge_var = jnp.arange(E) % V
    graph_mask = (jnp.zeros((V, E), jnp.float32)
                  .at[edge_var, jnp.arange(E)].set(1.0)).astype(jnp.bfloat16)

    # batch mask: variables 0..7 -> batch 0, 8..15 -> batch 1
    var_batch = (jnp.arange(V) >= V // 2).astype(jnp.int32)
    batch_mask = (jnp.zeros((V, B), jnp.float32)
                  .at[jnp.arange(V), var_batch].set(1.0))
    batch_mask_t = batch_mask.T

    # survey-style messages live in [0, 1]
    msg_v2f = jax.random.uniform(k[0], (E, M), jnp.float32)
    msg_f2v = jax.random.uniform(k[1], (E, M), jnp.float32)
    message_state = (msg_v2f, msg_f2v)

    active_variables = jnp.ones((V, 1), jnp.float32)
    edge_mask = jnp.ones((E, 1), jnp.float32)
    active_mask = jnp.ones((B, 1), jnp.float32)
    counters = jnp.zeros((B, 1), jnp.float32)

    # deterministic synthetic scorer parameters (message_dimension -> 1)
    # TODO(synk): the real scorer is an external nn.Module handed to __init__; a
    # deterministic linear scorer on graph-aggregated messages is used instead.
    scorer_w = jax.random.normal(k[2], (M, 1), jnp.float32) * 0.1
    scorer_b = jnp.zeros((1, 1), jnp.float32)

    # call 1: mirrors `_previous_function_state is None`
    message_state, prev_state, counters, active_mask, assignment, did = (
        sequential_decimator_forward(message_state, None, counters, False, graph_mask,
                                     batch_mask, batch_mask_t, active_variables, edge_mask,
                                     active_mask, scorer_w, scorer_b, tolerance, t_max))

    # call 2: messages nearly converged -> diff below tolerance -> decimation fires
    msg_f2v2 = msg_f2v + 1e-5 * jax.random.uniform(k[3], (E, M), jnp.float32)
    message_state2 = (msg_v2f, msg_f2v2)
    outs = sequential_decimator_forward(message_state2, prev_state, counters, True,
                                        graph_mask, batch_mask, batch_mask_t,
                                        active_variables, edge_mask, active_mask,
                                        scorer_w, scorer_b, tolerance, t_max)

    outs = jax.tree_util.tree_map(jax.block_until_ready, outs)
    _, prev2, counters2, active_mask2, assignment2, did2 = outs
    ok = bool(jnp.all(jnp.isfinite(assignment2)) & jnp.all(jnp.isfinite(counters2)))
    if ok:
        print("KERNEL_OK")
    else:
        print("KERNEL_FAILED")
</pallas_src>

<mosaic_0001>
module attributes {stable_mosaic.version = 11 : i64} {
  func.func @_fused_graph_kernel(%arg0: i32, %arg1: i32, %arg2: memref<1x8xf32, #tpu.memory_space<vmem>>, %arg3: memref<16x128xbf16, #tpu.memory_space<vmem>>, %arg4: memref<128x1xf32, #tpu.memory_space<vmem>>, %arg5: memref<128x1xf32, #tpu.memory_space<vmem>>, %arg6: memref<128x1xf32, #tpu.memory_space<vmem>>, %arg7: memref<128x8xf32, #tpu.memory_space<vmem>>, %arg8: memref<8x1xf32, #tpu.memory_space<vmem>>, %arg9: memref<16x1xf32, #tpu.memory_space<vmem>>, %arg10: memref<16x2xf32, #tpu.memory_space<vmem>>, %arg11: memref<16x8xf32, #tpu.memory_space<vmem>>, %arg12: memref<1x2x2xf32, #tpu.memory_space<vmem>>, %arg13: memref<16x8xf32, #tpu.memory_space<vmem>>) attributes {dimension_semantics = [#tpu.dimension_semantics<parallel>, #tpu.dimension_semantics<arbitrary>], iteration_bounds = array<i64: 1, 1>, scalar_prefetch = 0 : i64, scratch_operands = 1 : i64, tpu.core_type = #tpu.core_type<tc>, window_params = [{pipeline_mode = #tpu.pipeline_mode<synchronous>, transform_indices = @transform_0, window_bounds = array<i64: 1, 8>}, {transform_indices = @transform_1, window_bounds = array<i64: 16, 128>}, {transform_indices = @transform_2, window_bounds = array<i64: 128, 1>}, {transform_indices = @transform_3, window_bounds = array<i64: 128, 1>}, {transform_indices = @transform_4, window_bounds = array<i64: 128, 1>}, {transform_indices = @transform_5, window_bounds = array<i64: 128, 8>}, {pipeline_mode = #tpu.pipeline_mode<synchronous>, transform_indices = @transform_6, window_bounds = array<i64: 8, 1>}, {transform_indices = @transform_7, window_bounds = array<i64: 16, 1>}, {transform_indices = @transform_8, window_bounds = array<i64: 16, 2>}, {transform_indices = @transform_9, window_bounds = array<i64: 16, 8>}, {transform_indices = @transform_10, window_bounds = array<i64: 1, 2, 2>}]} {
    %c0_i32 = arith.constant 0 : i32
    %0 = arith.cmpi eq, %arg1, %c0_i32 : i32
    %1 = arith.extui %0 : i1 to i32
    %c0_i32_0 = arith.constant 0 : i32
    %2 = arith.cmpi ne, %1, %c0_i32_0 : i32
    scf.if %2 {
      %cst_25 = arith.constant 0.000000e+00 : f32
      %37 = vector.broadcast %cst_25 : f32 to vector<16x8xf32>
      %c0_26 = arith.constant 0 : index
      %c0_27 = arith.constant 0 : index
      %38 = vector.load %arg13[%c0_26, %c0_27] : memref<16x8xf32, #tpu.memory_space<vmem>>, vector<16x8xf32>
      tpu.vector_store %arg13[%c0_26, %c0_27], %37 {strides = array<i32>} : memref<16x8xf32, #tpu.memory_space<vmem>>, vector<16x8xf32>,
    } else {
    }
    %c0 = arith.constant 0 : index
    %c0_1 = arith.constant 0 : index
    %3 = vector.load %arg4[%c0, %c0_1] : memref<128x1xf32, #tpu.memory_space<vmem>>, vector<128x1xf32>
    %c0_2 = arith.constant 0 : index
    %c0_3 = arith.constant 0 : index
    %4 = vector.load %arg2[%c0_2, %c0_3] : memref<1x8xf32, #tpu.memory_space<vmem>>, vector<1x1xf32>
    %c0_4 = arith.constant 0 : index
    %c1 = arith.constant 1 : index
    %5 = vector.load %arg2[%c0_4, %c1] : memref<1x8xf32, #tpu.memory_space<vmem>>, vector<1x1xf32>
    %6 = vector.broadcast %4 : vector<1x1xf32> to vector<128x1xf32>
    %7 = arith.subf %3, %6 : vector<128x1xf32>
    %cst = arith.constant 3.000000e+01 : f32
    %8 = vector.broadcast %cst : f32 to vector<128x1xf32>
    %9 = arith.mulf %8, %7 : vector<128x1xf32>
    %10 = math.exp %9 : vector<128x1xf32>
    %c0_5 = arith.constant 0 : index
    %c0_6 = arith.constant 0 : index
    %11 = vector.load %arg5[%c0_5, %c0_6] : memref<128x1xf32, #tpu.memory_space<vmem>>, vector<128x1xf32>
    %12 = arith.subf %11, %3 : vector<128x1xf32>
    %13 = math.absf %12 : vector<128x1xf32>
    %c0_7 = arith.constant 0 : index
    %c0_8 = arith.constant 0 : index
    %14 = vector.load %arg6[%c0_7, %c0_8] : memref<128x1xf32, #tpu.memory_space<vmem>>, vector<128x1xf32>
    %15 = arith.mulf %13, %14 : vector<128x1xf32>
    %16 = vector.broadcast %5 : vector<1x1xf32> to vector<128x1xf32>
    %17 = arith.subf %15, %16 : vector<128x1xf32>
    %cst_9 = arith.constant 3.000000e+01 : f32
    %18 = vector.broadcast %cst_9 : f32 to vector<128x1xf32>
    %19 = arith.mulf %18, %17 : vector<128x1xf32>
    %20 = math.exp %19 : vector<128x1xf32>
    %c0_10 = arith.constant 0 : index
    %c0_11 = arith.constant 0 : index
    %21 = vector.load %arg7[%c0_10, %c0_11] : memref<128x8xf32, #tpu.memory_space<vmem>>, vector<128x8xf32>
    %c0_12 = arith.constant 0 : index
    %c0_13 = arith.constant 0 : index
    %22 = vector.load %arg8[%c0_12, %c0_13] : memref<8x1xf32, #tpu.memory_space<vmem>>, vector<8x1xf32>
    %cst_14 = arith.constant dense<0.000000e+00> : vector<128x1xf32>
    %23 = tpu.matmul %21, %22, %cst_14 {dimension_numbers = #tpu.dot_dimension_numbers<[1], [0], [0], [1], [0, 0, 1, 1], [], []>} : vector<128x8xf32>, vector<8x1xf32>, vector<128x1xf32> -> vector<128x1xf32>
    %cst_15 = arith.constant 0.000000e+00 : f32
    %24 = vector.broadcast %cst_15 : f32 to vector<128x3xf32>
    %25 = arith.mulf %3, %10 : vector<128x1xf32>
    %26 = arith.mulf %15, %20 : vector<128x1xf32>
    %27 = tpu.concatenate %25, %10, %26, %20, %23, %24 in 1 : vector<128x1xf32>, vector<128x1xf32>, vector<128x1xf32>, vector<128x1xf32>, vector<128x1xf32>, vector<128x3xf32> -> vector<128x8xf32>
    %c0_16 = arith.constant 0 : index
    %c0_17 = arith.constant 0 : index
    %28 = vector.load %arg3[%c0_16, %c0_17] : memref<16x128xbf16, #tpu.memory_space<vmem>>, vector<16x128xbf16>
    %29 = arith.extf %28 : vector<16x128xbf16> to vector<16x128xf32>
    %c0_18 = arith.constant 0 : index
    %c0_19 = arith.constant 0 : index
    %30 = vector.load %arg13[%c0_18, %c0_19] : memref<16x8xf32, #tpu.memory_space<vmem>>, vector<16x8xf32>
    %cst_20 = arith.constant dense<0.000000e+00> : vector<16x8xf32>
    %31 = tpu.matmul %29, %27, %cst_20 {dimension_numbers = #tpu.dot_dimension_numbers<[1], [0], [0], [1], [0, 0, 1, 1], [], []>} : vector<16x128xf32>, vector<128x8xf32>, vector<16x8xf32> -> vector<16x8xf32>
    %32 = arith.addf %30, %31 : vector<16x8xf32>
    %c0_21 = arith.constant 0 : index
    %c0_22 = arith.constant 0 : index
    %33 = vector.load %arg13[%c0_21, %c0_22] : memref<16x8xf32, #tpu.memory_space<vmem>>, vector<16x8xf32>
    tpu.vector_store %arg13[%c0_21, %c0_22], %32 {strides = array<i32>} : memref<16x8xf32, #tpu.memory_space<vmem>>, vector<16x8xf32>,
    %c0_i32_23 = arith.constant 0 : i32
    %34 = arith.cmpi eq, %arg1, %c0_i32_23 : i32
    %35 = arith.extui %34 : i1 to i32
    %c0_i32_24 = arith.constant 0 : i32
    %36 = arith.cmpi ne, %35, %c0_i32_24 : i32
    scf.if %36 {
      %c0_25 = arith.constant 0 : index
      %c0_26 = arith.constant 0 : index
      %37 = vector.load %arg13[%c0_25, %c0_26] : memref<16x8xf32, #tpu.memory_space<vmem>>, vector<16x8xf32>
      %c0_27 = arith.constant 0 : index
      %c0_28 = arith.constant 0 : index
      %38 = vector.load %arg9[%c0_27, %c0_28] : memref<16x1xf32, #tpu.memory_space<vmem>>, vector<16x1xf32>
      %39 = vector.extract_strided_slice %37 {offsets = [0, 1], sizes = [16, 1], strides = [1, 1]} : vector<16x8xf32> to vector<16x1xf32>
      %cst_29 = arith.constant 1.000000e-10 : f32
      %40 = vector.broadcast %cst_29 : f32 to vector<16x1xf32>
      %41 = arith.addf %39, %40 : vector<16x1xf32>
      %42 = tpu.reciprocal %41 {approx = true} : vector<16x1xf32> -> vector<16x1xf32>
      %43 = vector.extract_strided_slice %37 {offsets = [0, 3], sizes = [16, 1], strides = [1, 1]} : vector<16x8xf32> to vector<16x1xf32>
      %cst_30 = arith.constant 1.000000e-10 : f32
      %44 = vector.broadcast %cst_30 : f32 to vector<16x1xf32>
      %45 = arith.addf %43, %44 : vector<16x1xf32>
      %46 = tpu.reciprocal %45 {approx = true} : vector<16x1xf32> -> vector<16x1xf32>
      %47 = vector.extract_strided_slice %37 {offsets = [0, 0], sizes = [16, 1], strides = [1, 1]} : vector<16x8xf32> to vector<16x1xf32>
      %48 = arith.mulf %47, %42 : vector<16x1xf32>
      %49 = arith.mulf %48, %38 : vector<16x1xf32>
      %50 = vector.extract_strided_slice %37 {offsets = [0, 2], sizes = [16, 1], strides = [1, 1]} : vector<16x8xf32> to vector<16x1xf32>
      %51 = arith.mulf %50, %46 : vector<16x1xf32>
      %52 = arith.mulf %51, %38 : vector<16x1xf32>
      %53 = vector.extract_strided_slice %37 {offsets = [0, 4], sizes = [16, 1], strides = [1, 1]} : vector<16x8xf32> to vector<16x1xf32>
      %c0_31 = arith.constant 0 : index
      %c2 = arith.constant 2 : index
      %54 = vector.load %arg2[%c0_31, %c2] : memref<1x8xf32, #tpu.memory_space<vmem>>, vector<1x1xf32>
      %55 = vector.broadcast %54 : vector<1x1xf32> to vector<16x1xf32>
      %56 = arith.addf %53, %55 : vector<16x1xf32>
      %57 = math.absf %56 : vector<16x1xf32>
      %58 = arith.mulf %57, %38 : vector<16x1xf32>
      %cst_32 = arith.constant 0.000000e+00 : f32
      %59 = vector.broadcast %cst_32 : f32 to vector<16x4xf32>
      %60 = tpu.concatenate %49, %52, %56, %58, %59 in 1 : vector<16x1xf32>, vector<16x1xf32>, vector<16x1xf32>, vector<16x1xf32>, vector<16x4xf32> -> vector<16x8xf32>
      %c0_33 = arith.constant 0 : index
      %c0_34 = arith.constant 0 : index
      %61 = vector.load %arg11[%c0_33, %c0_34] : memref<16x8xf32, #tpu.memory_space<vmem>>, vector<16x8xf32>
      tpu.vector_store %arg11[%c0_33, %c0_34], %60 {strides = array<i32>} : memref<16x8xf32, #tpu.memory_space<vmem>>, vector<16x8xf32>,
      %c0_35 = arith.constant 0 : index
      %c0_36 = arith.constant 0 : index
      %62 = vector.load %arg10[%c0_35, %c0_36] : memref<16x2xf32, #tpu.memory_space<vmem>>, vector<16x2xf32>
      %cst_37 = arith.constant 0.000000e+00 : f32
      %63 = vector.broadcast %cst_37 : f32 to vector<16x2xf32>
      %64 = arith.cmpf ogt, %62, %63 : vector<16x2xf32>
      %cst_38 = arith.constant -1.000000e+30 : f32
      %65 = vector.shape_cast %49 : vector<16x1xf32> to vector<16x1xf32>
      %66 = vector.broadcast %65 : vector<16x1xf32> to vector<16x2xf32>
      %67 = vector.broadcast %cst_38 : f32 to vector<16x2xf32>
      %68 = arith.select %64, %66, %67 : vector<16x2xi1>, vector<16x2xf32>
      %cst_39 = arith.constant dense<0xFF800000> : vector<2xf32>
      %69 = vector.multi_reduction <maximumf>, %68, %cst_39 [0] : vector<16x2xf32> to vector<2xf32>
      %70 = vector.shape_cast %69 : vector<2xf32> to vector<1x2xf32>
      %cst_40 = arith.constant 0.000000e+00 : f32
      %71 = vector.broadcast %cst_40 : f32 to vector<16x2xf32>
      %72 = arith.cmpf ogt, %62, %71 : vector<16x2xf32>
      %cst_41 = arith.constant -1.000000e+30 : f32
      %73 = vector.shape_cast %52 : vector<16x1xf32> to vector<16x1xf32>
      %74 = vector.broadcast %73 : vector<16x1xf32> to vector<16x2xf32>
      %75 = vector.broadcast %cst_41 : f32 to vector<16x2xf32>
      %76 = arith.select %72, %74, %75 : vector<16x2xi1>, vector<16x2xf32>
      %cst_42 = arith.constant dense<0xFF800000> : vector<2xf32>
      %77 = vector.multi_reduction <maximumf>, %76, %cst_42 [0] : vector<16x2xf32> to vector<2xf32>
      %78 = vector.shape_cast %77 : vector<2xf32> to vector<1x2xf32>
      %79 = tpu.concatenate %70, %78 in 0 : vector<1x2xf32>, vector<1x2xf32> -> vector<2x2xf32>
      %80 = vector.shape_cast %79 : vector<2x2xf32> to vector<1x2x2xf32>
      %c0_43 = arith.constant 0 : index
      %c0_44 = arith.constant 0 : index
      %c0_45 = arith.constant 0 : index
      %81 = vector.load %arg12[%c0_43, %c0_44, %c0_45] : memref<1x2x2xf32, #tpu.memory_space<vmem>>, vector<1x2x2xf32>
      tpu.vector_store %arg12[%c0_43, %c0_44, %c0_45], %80 {strides = array<i32>} : memref<1x2x2xf32, #tpu.memory_space<vmem>>, vector<1x2x2xf32>,
    } else {
    }
    return
  }
  func.func @transform_0(%arg0: i32, %arg1: i32) -> (i32, i32) {
    %c0_i32 = arith.constant 0 : i32
    %c0_i32_0 = arith.constant 0 : i32
    %c0_i32_1 = arith.constant 0 : i32
    return %c0_i32, %c0_i32_0 : i32, i32
  }
  func.func @transform_1(%arg0: i32, %arg1: i32) -> (i32, i32) {
    %c0_i32 = arith.constant 0 : i32
    return %arg0, %arg1 : i32, i32
  }
  func.func @transform_2(%arg0: i32, %arg1: i32) -> (i32, i32) {
    %c0_i32 = arith.constant 0 : i32
    %c0_i32_0 = arith.constant 0 : i32
    return %arg1, %c0_i32 : i32, i32
  }
  func.func @transform_3(%arg0: i32, %arg1: i32) -> (i32, i32) {
    %c0_i32 = arith.constant 0 : i32
    %c0_i32_0 = arith.constant 0 : i32
    return %arg1, %c0_i32 : i32, i32
  }
  func.func @transform_4(%arg0: i32, %arg1: i32) -> (i32, i32) {
    %c0_i32 = arith.constant 0 : i32
    %c0_i32_0 = arith.constant 0 : i32
    return %arg1, %c0_i32 : i32, i32
  }
  func.func @transform_5(%arg0: i32, %arg1: i32) -> (i32, i32) {
    %c0_i32 = arith.constant 0 : i32
    %c0_i32_0 = arith.constant 0 : i32
    return %arg1, %c0_i32 : i32, i32
  }
  func.func @transform_6(%arg0: i32, %arg1: i32) -> (i32, i32) {
    %c0_i32 = arith.constant 0 : i32
    %c0_i32_0 = arith.constant 0 : i32
    %c0_i32_1 = arith.constant 0 : i32
    return %c0_i32, %c0_i32_0 : i32, i32
  }
  func.func @transform_7(%arg0: i32, %arg1: i32) -> (i32, i32) {
    %c0_i32 = arith.constant 0 : i32
    %c0_i32_0 = arith.constant 0 : i32
    return %arg0, %c0_i32 : i32, i32
  }
  func.func @transform_8(%arg0: i32, %arg1: i32) -> (i32, i32) {
    %c0_i32 = arith.constant 0 : i32
    %c0_i32_0 = arith.constant 0 : i32
    return %arg0, %c0_i32 : i32, i32
  }
  func.func @transform_9(%arg0: i32, %arg1: i32) -> (i32, i32) {
    %c0_i32 = arith.constant 0 : i32
    %c0_i32_0 = arith.constant 0 : i32
    return %arg0, %c0_i32 : i32, i32
  }
  func.func @transform_10(%arg0: i32, %arg1: i32) -> (i32, i32, i32) {
    %c0_i32 = arith.constant 0 : i32
    %c0_i32_0 = arith.constant 0 : i32
    %c0_i32_1 = arith.constant 0 : i32
    return %arg0, %c0_i32, %c0_i32_0 : i32, i32, i32
  }
}

</mosaic_0001>

<llo_original>
// kernel: tpu_custom_call.1
$region0: #{tpu_custom_call.1}
  #allocation0 [shape = 'u32[]', space=smem, size = 0x4, offset = 0x4, fixed_abs, tag = 'smem constant byte address 0x4 - core index']
  #allocation1 [shape = 'u32[144,128]{1,0:T(1,128)}', space=vmem, size = 0x12000, scoped, tag = 'internal scratch']
  #allocation2 [shape = 'f32[16,8]{1,0:T(8,128)}', space=vmem, size = 0x2000, scoped, tag = 'scratch operand']
  %s0 = inlined_call_operand.vmem [shape: f32[1,8], index: 0, kind: input, shape index: {}]
  %s1 = inlined_call_operand.vmem [shape: bf16[16,128], index: 1, kind: input, shape index: {}]
  %s2 = inlined_call_operand.vmem [shape: f32[128,1], index: 2, kind: input, shape index: {}]
  %s3 = inlined_call_operand.vmem [shape: f32[128,1], index: 3, kind: input, shape index: {}]
  %s4 = inlined_call_operand.vmem [shape: f32[128,1], index: 4, kind: input, shape index: {}]
  %s5 = inlined_call_operand.vmem [shape: f32[128,8], index: 5, kind: input, shape index: {}]
  %s6 = inlined_call_operand.vmem [shape: f32[8,1], index: 6, kind: input, shape index: {}]
  %s7 = inlined_call_operand.vmem [shape: f32[16,1], index: 7, kind: input, shape index: {}]
  %s8 = inlined_call_operand.vmem [shape: f32[16,2], index: 8, kind: input, shape index: {}]
  %s9 = inlined_call_operand.vmem [shape: f32[16,8], index: 9, kind: output, shape index: {0}]
  %s10 = inlined_call_operand.hbm [shape: f32[1,2,2], index: 10, kind: output, shape index: {1}]
  %11 = xla_tuple %s9, %s10
  %s12 = sld [smem:[#allocation0]]
  $region62: #{tpu_custom_call.1} parent=0
    _
  %s14 = ssub.s32 1, %s12
  %s15 = scalar_select 0, %s14, %s12
  $region1: #{tpu_custom_call.1} parent=0
    #allocation3 [shape = 'u8[1024]{0}', space=vmem, size = 0x400, scoped, tag = 'output window, operand 1, single buffered']
    #allocation4 [shape = 's32[1]{0}', space=sflag, size = 0x4, scoped, tag = 'scoped memory for tpu_custom_call.1']
    %16 = vsyncpa [#allocation4], 0
    // Predicated region
    $region2: #{tpu_custom_call.1} parent=1 // pred_check
      _
    $region3: #{tpu_custom_call.1} parent=1 // pred_check_branch
      %18 = sbr.rel (0) target = $region5
    $region4: #{tpu_custom_call.1} parent=1 // pred_region
      _
    $region5: #{tpu_custom_call.1} parent=1 // pred_fallthru
      _
    // Predicated region
    $region6: #{tpu_custom_call.1} parent=1 // pred_check
      _
    $region7: #{tpu_custom_call.1} parent=1 // pred_check_branch
      %20 = sbr.rel (0) target = $region9
    $region8: #{tpu_custom_call.1} parent=1 // pred_region
      _
    $region9: #{tpu_custom_call.1} parent=1 // pred_fallthru
      _
    // Predicated region
    $region10: #{tpu_custom_call.1} parent=1 // pred_check
      _
    $region11: #{tpu_custom_call.1} parent=1 // pred_check_branch
      %22 = sbr.rel (0) target = $region13
    $region12: #{tpu_custom_call.1} parent=1 // pred_region
      _
    $region13: #{tpu_custom_call.1} parent=1 // pred_fallthru
      _
    // Predicated region
    $region14: #{tpu_custom_call.1} parent=1 // pred_check
      _
    $region15: #{tpu_custom_call.1} parent=1 // pred_check_branch
      %24 = sbr.rel (0) target = $region17
    $region16: #{tpu_custom_call.1} parent=1 // pred_region
      _
    $region17: #{tpu_custom_call.1} parent=1 // pred_fallthru
      _
    // Predicated region
    $region18: #{tpu_custom_call.1} parent=1 // pred_check
      _
    $region19: #{tpu_custom_call.1} parent=1 // pred_check_branch
      %26 = sbr.rel (0) target = $region21
    $region20: #{tpu_custom_call.1} parent=1 // pred_region
      _
    $region21: #{tpu_custom_call.1} parent=1 // pred_fallthru
      _
    // Predicated region
    $region22: #{tpu_custom_call.1} parent=1 // pred_check
      _
    $region23: #{tpu_custom_call.1} parent=1 // pred_check_branch
      %28 = sbr.rel (0) target = $region25
    $region24: #{tpu_custom_call.1} parent=1 // pred_region
      _
    $region25: #{tpu_custom_call.1} parent=1 // pred_fallthru
      _
    // Predicated region
    $region26: #{tpu_custom_call.1} parent=1 // pred_check
      _
    $region27: #{tpu_custom_call.1} parent=1 // pred_check_branch
      %30 = sbr.rel (0) target = $region29
    $region28: #{tpu_custom_call.1} parent=1 // pred_region
      _
    $region29: #{tpu_custom_call.1} parent=1 // pred_fallthru
      _
    // Predicated region
    $region30: #{tpu_custom_call.1} parent=1 // pred_check
      _
    $region31: #{tpu_custom_call.1} parent=1 // pred_check_branch
      %32 = sbr.rel (0) target = $region33
    $region32: #{tpu_custom_call.1} parent=1 // pred_region
      _
    $region33: #{tpu_custom_call.1} parent=1 // pred_fallthru
      _
    // Predicated region
    $region34: #{tpu_custom_call.1} parent=1 // pred_check
      _
    $region35: #{tpu_custom_call.1} parent=1 // pred_check_branch
      %34 = sbr.rel (0) target = $region37
    $region36: #{tpu_custom_call.1} parent=1 // pred_region
      _
    $region37: #{tpu_custom_call.1} parent=1 // pred_fallthru
      _
    %p35 = scmp.eq.s32.totalorder 0, 0
    // Predicated region
    $region38: #{tpu_custom_call.1} parent=1 // pred_check
      %p36 = pneg %p35
    $region39: #{tpu_custom_call.1} parent=1 // pred_check_branch
      %38 = sbr.rel (%p36) target = $region41
    $region40: #{tpu_custom_call.1} parent=1 // pred_region
      %vm39 = vcmask 64512
      %40 = vst.msk [vmem:[#allocation2] sm:$0xff] %vm39, 0.0
      %41 = vst.msk [vmem:[#allocation2 + $0x8] sm:$0xff] %vm39, 0.0
    $region41: #{tpu_custom_call.1} parent=1 // pred_fallthru
      _
    %v42 = vld [vmem:[%s2] sm:$0xff]
    %v43 = vld [vmem:[%s2 + $0x8] sm:$0xff]
    %v44 = vld [vmem:[%s2 + $0x10] sm:$0xff]
    %v45 = vld [vmem:[%s2 + $0x18] sm:$0xff]
    %v46 = vld [vmem:[%s2 + $0x20] sm:$0xff]
    %v47 = vld [vmem:[%s2 + $0x28] sm:$0xff]
    %v48 = vld [vmem:[%s2 + $0x30] sm:$0xff]
    %v49 = vld [vmem:[%s2 + $0x38] sm:$0xff]
    %v50 = vld [vmem:[%s2 + $0x40] sm:$0xff]
    %v51 = vld [vmem:[%s2 + $0x48] sm:$0xff]
    %v52 = vld [vmem:[%s2 + $0x50] sm:$0xff]
    %v53 = vld [vmem:[%s2 + $0x58] sm:$0xff]
    %v54 = vld [vmem:[%s2 + $0x60] sm:$0xff]
    %v55 = vld [vmem:[%s2 + $0x68] sm:$0xff]
    %v56 = vld [vmem:[%s2 + $0x70] sm:$0xff]
    %v57 = vld [vmem:[%s2 + $0x78] sm:$0xff]
    %v58 = vld [vmem:[%s0] sm:$0x1]
    %v60 = vlaneseq
    %v61 = vshrl.u32 %v60, 7
    %v62 = vsub.s32 0, %v61
    %v63 = vrot.slane %v58, %v62
    %v65 = vsub.f32 %v42, %v63
    %v66 = vsub.f32 %v43, %v63
    %v67 = vsub.f32 %v44, %v63
    %v68 = vsub.f32 %v45, %v63
    %v69 = vsub.f32 %v46, %v63
    %v70 = vsub.f32 %v47, %v63
    %v71 = vsub.f32 %v48, %v63
    %v72 = vsub.f32 %v49, %v63
    %v73 = vsub.f32 %v50, %v63
    %v74 = vsub.f32 %v51, %v63
    %v75 = vsub.f32 %v52, %v63
    %v76 = vsub.f32 %v53, %v63
    %v77 = vsub.f32 %v54, %v63
    %v78 = vsub.f32 %v55, %v63
    %v79 = vsub.f32 %v56, %v63
    %v80 = vsub.f32 %v57, %v63
    %v81 = vmul.f32 %v65, 30.0
    %v82 = vmul.f32 %v66, 30.0
    %v83 = vmul.f32 %v67, 30.0
    %v84 = vmul.f32 %v68, 30.0
    %v85 = vmul.f32 %v69, 30.0
    %v86 = vmul.f32 %v70, 30.0
    %v87 = vmul.f32 %v71, 30.0
    %v88 = vmul.f32 %v72, 30.0
    %v89 = vmul.f32 %v73, 30.0
    %v90 = vmul.f32 %v74, 30.0
    %v91 = vmul.f32 %v75, 30.0
    %v92 = vmul.f32 %v76, 30.0
    %v93 = vmul.f32 %v77, 30.0
    %v94 = vmul.f32 %v78, 30.0
    %v95 = vmul.f32 %v79, 30.0
    %v96 = vmul.f32 %v80, 30.0
    %v97 = vmul.f32 %v81, 1.442695
    %v98 = vpow.pop %v97
    %v99 = vmul.f32 %v82, 1.442695
    %v100 = vpow.pop %v99
    %v101 = vmul.f32 %v83, 1.442695
    %v102 = vpow.pop %v101
    %v103 = vmul.f32 %v84, 1.442695
    %v104 = vpow.pop %v103
    %v105 = vmul.f32 %v85, 1.442695
    %v106 = vpow.pop %v105
    %v107 = vmul.f32 %v86, 1.442695
    %v108 = vpow.pop %v107
    %v109 = vmul.f32 %v87, 1.442695
    %v110 = vpow.pop %v109
    %v111 = vmul.f32 %v88, 1.442695
    %v112 = vpow.pop %v111
    %v113 = vmul.f32 %v89, 1.442695
    %v114 = vpow.pop %v113
    %v115 = vmul.f32 %v90, 1.442695
    %v116 = vpow.pop %v115
    %v117 = vmul.f32 %v91, 1.442695
    %v118 = vpow.pop %v117
    %v119 = vmul.f32 %v92, 1.442695
    %v120 = vpow.pop %v119
    %v121 = vmul.f32 %v93, 1.442695
    %v122 = vpow.pop %v121
    %v123 = vmul.f32 %v94, 1.442695
    %v124 = vpow.pop %v123
    %v125 = vmul.f32 %v95, 1.442695
    %v126 = vpow.pop %v125
    %v127 = vmul.f32 %v96, 1.442695
    %v128 = vpow.pop %v127
    %v129 = vld [vmem:[%s3] sm:$0xff]
    %v130 = vld [vmem:[%s3 + $0x8] sm:$0xff]
    %v131 = vld [vmem:[%s3 + $0x10] sm:$0xff]
    %v132 = vld [vmem:[%s3 + $0x18] sm:$0xff]
    %v133 = vld [vmem:[%s3 + $0x20] sm:$0xff]
    %v134 = vld [vmem:[%s3 + $0x28] sm:$0xff]
    %v135 = vld [vmem:[%s3 + $0x30] sm:$0xff]
    %v136 = vld [vmem:[%s3 + $0x38] sm:$0xff]
    %v137 = vld [vmem:[%s3 + $0x40] sm:$0xff]
    %v138 = vld [vmem:[%s3 + $0x48] sm:$0xff]
    %v139 = vld [vmem:[%s3 + $0x50] sm:$0xff]
    %v140 = vld [vmem:[%s3 + $0x58] sm:$0xff]
    %v141 = vld [vmem:[%s3 + $0x60] sm:$0xff]
    %v142 = vld [vmem:[%s3 + $0x68] sm:$0xff]
    %v143 = vld [vmem:[%s3 + $0x70] sm:$0xff]
    %v144 = vld [vmem:[%s3 + $0x78] sm:$0xff]
    %v145 = vsub.f32 %v129, %v42
    %v146 = vsub.f32 %v130, %v43
    %v147 = vsub.f32 %v131, %v44
    %v148 = vsub.f32 %v132, %v45
    %v149 = vsub.f32 %v133, %v46
    %v150 = vsub.f32 %v134, %v47
    %v151 = vsub.f32 %v135, %v48
    %v152 = vsub.f32 %v136, %v49
    %v153 = vsub.f32 %v137, %v50
    %v154 = vsub.f32 %v138, %v51
    %v155 = vsub.f32 %v139, %v52
    %v156 = vsub.f32 %v140, %v53
    %v157 = vsub.f32 %v141, %v54
    %v158 = vsub.f32 %v142, %v55
    %v159 = vsub.f32 %v143, %v56
    %v160 = vsub.f32 %v144, %v57
    %v161 = vand.u32 2147483647, %v145
    %v162 = vand.u32 2147483647, %v146
    %v163 = vand.u32 2147483647, %v147
    %v164 = vand.u32 2147483647, %v148
    %v165 = vand.u32 2147483647, %v149
    %v166 = vand.u32 2147483647, %v150
    %v167 = vand.u32 2147483647, %v151
    %v168 = vand.u32 2147483647, %v152
    %v169 = vand.u32 2147483647, %v153
    %v170 = vand.u32 2147483647, %v154
    %v171 = vand.u32 2147483647, %v155
    %v172 = vand.u32 2147483647, %v156
    %v173 = vand.u32 2147483647, %v157
    %v174 = vand.u32 2147483647, %v158
    %v175 = vand.u32 2147483647, %v159
    %v176 = vand.u32 2147483647, %v160
    %v177 = vld [vmem:[%s4] sm:$0xff]
    %v178 = vld [vmem:[%s4 + $0x8] sm:$0xff]
    %v179 = vld [vmem:[%s4 + $0x10] sm:$0xff]
    %v180 = vld [vmem:[%s4 + $0x18] sm:$0xff]
    %v181 = vld [vmem:[%s4 + $0x20] sm:$0xff]
    %v182 = vld [vmem:[%s4 + $0x28] sm:$0xff]
    %v183 = vld [vmem:[%s4 + $0x30] sm:$0xff]
    %v184 = vld [vmem:[%s4 + $0x38] sm:$0xff]
    %v185 = vld [vmem:[%s4 + $0x40] sm:$0xff]
    %v186 = vld [vmem:[%s4 + $0x48] sm:$0xff]
    %v187 = vld [vmem:[%s4 + $0x50] sm:$0xff]
    %v188 = vld [vmem:[%s4 + $0x58] sm:$0xff]
    %v189 = vld [vmem:[%s4 + $0x60] sm:$0xff]
    %v190 = vld [vmem:[%s4 + $0x68] sm:$0xff]
    %v191 = vld [vmem:[%s4 + $0x70] sm:$0xff]
    %v192 = vld [vmem:[%s4 + $0x78] sm:$0xff]
    %v193 = vmul.f32 %v161, %v177
    %v194 = vmul.f32 %v162, %v178
    %v195 = vmul.f32 %v163, %v179
    %v196 = vmul.f32 %v164, %v180
    %v197 = vmul.f32 %v165, %v181
    %v198 = vmul.f32 %v166, %v182
    %v199 = vmul.f32 %v167, %v183
    %v200 = vmul.f32 %v168, %v184
    %v201 = vmul.f32 %v169, %v185
    %v202 = vmul.f32 %v170, %v186
    %v203 = vmul.f32 %v171, %v187
    %v204 = vmul.f32 %v172, %v188
    %v205 = vmul.f32 %v173, %v189
    %v206 = vmul.f32 %v174, %v190
    %v207 = vmul.f32 %v175, %v191
    %v208 = vmul.f32 %v176, %v192
    %209 = vrot.lane.b32.xlu0 %v63, 127
    %v210 = vpop.permute.xlu0 %209
    %v212 = vsub.f32 %v193, %v210
    %v213 = vsub.f32 %v194, %v210
    %v214 = vsub.f32 %v195, %v210
    %v215 = vsub.f32 %v196, %v210
    %v216 = vsub.f32 %v197, %v210
    %v217 = vsub.f32 %v198, %v210
    %v218 = vsub.f32 %v199, %v210
    %v219 = vsub.f32 %v200, %v210
    %v220 = vsub.f32 %v201, %v210
    %v221 = vsub.f32 %v202, %v210
    %v222 = vsub.f32 %v203, %v210
    %v223 = vsub.f32 %v204, %v210
    %v224 = vsub.f32 %v205, %v210
    %v225 = vsub.f32 %v206, %v210
    %v226 = vsub.f32 %v207, %v210
    %v227 = vsub.f32 %v208, %v210
    %v228 = vmul.f32 %v212, 30.0
    %v229 = vmul.f32 %v213, 30.0
    %v230 = vmul.f32 %v214, 30.0
    %v231 = vmul.f32 %v215, 30.0
    %v232 = vmul.f32 %v216, 30.0
    %v233 = vmul.f32 %v217, 30.0
    %v234 = vmul.f32 %v218, 30.0
    %v235 = vmul.f32 %v219, 30.0
    %v236 = vmul.f32 %v220, 30.0
    %v237 = vmul.f32 %v221, 30.0
    %v238 = vmul.f32 %v222, 30.0
    %v239 = vmul.f32 %v223, 30.0
    %v240 = vmul.f32 %v224, 30.0
    %v241 = vmul.f32 %v225, 30.0
    %v242 = vmul.f32 %v226, 30.0
    %v243 = vmul.f32 %v227, 30.0
    %v244 = vmul.f32 %v228, 1.442695
    %v245 = vpow.pop %v244
    %v246 = vmul.f32 %v229, 1.442695
    %v247 = vpow.pop %v246
    %v248 = vmul.f32 %v230, 1.442695
    %v249 = vpow.pop %v248
    %v250 = vmul.f32 %v231, 1.442695
    %v251 = vpow.pop %v250
    %v252 = vmul.f32 %v232, 1.442695
    %v253 = vpow.pop %v252
    %v254 = vmul.f32 %v233, 1.442695
    %v255 = vpow.pop %v254
    %v256 = vmul.f32 %v234, 1.442695
    %v257 = vpow.pop %v256
    %v258 = vmul.f32 %v235, 1.442695
    %v259 = vpow.pop %v258
    %v260 = vmul.f32 %v236, 1.442695
    %v261 = vpow.pop %v260
    %v262 = vmul.f32 %v237, 1.442695
    %v263 = vpow.pop %v262
    %v264 = vmul.f32 %v238, 1.442695
    %v265 = vpow.pop %v264
    %v266 = vmul.f32 %v239, 1.442695
    %v267 = vpow.pop %v266
    %v268 = vmul.f32 %v240, 1.442695
    %v269 = vpow.pop %v268
    %v270 = vmul.f32 %v241, 1.442695
    %v271 = vpow.pop %v270
    %v272 = vmul.f32 %v242, 1.442695
    %v273 = vpow.pop %v272
    %v274 = vmul.f32 %v243, 1.442695
    %v275 = vpow.pop %v274
    %v276 = vld [vmem:[%s5] sm:$0xff]
    %v277 = vld [vmem:[%s5 + $0x8] sm:$0xff]
    %v278 = vld [vmem:[%s5 + $0x10] sm:$0xff]
    %v279 = vld [vmem:[%s5 + $0x18] sm:$0xff]
    %v280 = vld [vmem:[%s5 + $0x20] sm:$0xff]
    %v281 = vld [vmem:[%s5 + $0x28] sm:$0xff]
    %v282 = vld [vmem:[%s5 + $0x30] sm:$0xff]
    %v283 = vld [vmem:[%s5 + $0x38] sm:$0xff]
    %v284 = vld [vmem:[%s5 + $0x40] sm:$0xff]
    %v285 = vld [vmem:[%s5 + $0x48] sm:$0xff]
    %v286 = vld [vmem:[%s5 + $0x50] sm:$0xff]
    %v287 = vld [vmem:[%s5 + $0x58] sm:$0xff]
    %v288 = vld [vmem:[%s5 + $0x60] sm:$0xff]
    %v289 = vld [vmem:[%s5 + $0x68] sm:$0xff]
    %v290 = vld [vmem:[%s5 + $0x70] sm:$0xff]
    %v291 = vld [vmem:[%s5 + $0x78] sm:$0xff]
    %v292 = vld [vmem:[%s6] sm:$0xff]
    %vm293 = vcmask 64512
    %v295 = vsel %vm293, %v276, 0
    %v298 = vsel %vm293, %v277, 0
    %v301 = vsel %vm293, %v278, 0
    %v304 = vsel %vm293, %v279, 0
    %v307 = vsel %vm293, %v280, 0
    %v310 = vsel %vm293, %v281, 0
    %v313 = vsel %vm293, %v282, 0
    %v316 = vsel %vm293, %v283, 0
    %v319 = vsel %vm293, %v284, 0
    %v322 = vsel %vm293, %v285, 0
    %v325 = vsel %vm293, %v286, 0
    %v328 = vsel %vm293, %v287, 0
    %v331 = vsel %vm293, %v288, 0
    %v334 = vsel %vm293, %v289, 0
    %v337 = vsel %vm293, %v290, 0
    %v340 = vsel %vm293, %v291, 0
    %342 = vmatprep.subr.mxu0 0.0
    %343 = vmatpush1.msra.mxu0 %v292
    %344 = vmatprep.subr.mxu0 0.0
    %345 = vmatpush1.msra.mxu0 0.0
    %346 = vmatprep.subr.mxu0 0.0
    %347 = vmatpush1.msra.mxu0 0.0
    %348 = vmatprep.subr.mxu0 0.0
    %349 = vmatpush1.msra.mxu0 0.0
    %350 = vmatprep.subr.mxu0 0.0
    %351 = vmatpush1.msra.mxu0 0.0
    %352 = vmatprep.subr.mxu0 0.0
    %353 = vmatpush1.msra.mxu0 0.0
    %354 = vmatprep.subr.mxu0 0.0
    %355 = vmatpush1.msra.mxu0 0.0
    %356 = vmatprep.subr.mxu0 0.0
    %357 = vmatpush1.msra.mxu0 0.0
    %358 = vmatprep.subr.mxu0 0.0
    %359 = vmatpush1.msra.mxu0 0.0
    %360 = vmatprep.subr.mxu0 0.0
    %361 = vmatpush1.msra.mxu0 0.0
    %362 = vmatprep.subr.mxu0 0.0
    %363 = vmatpush1.msra.mxu0 0.0
    %364 = vmatprep.subr.mxu0 0.0
    %365 = vmatpush1.msra.mxu0 0.0
    %366 = vmatprep.subr.mxu0 0.0
    %367 = vmatpush1.msra.mxu0 0.0
    %368 = vmatprep.subr.mxu0 0.0
    %369 = vmatpush1.msra.mxu0 0.0
    %370 = vmatprep.subr.mxu0 0.0
    %371 = vmatpush1.msra.mxu0 0.0
    %372 = vmatprep.subr.mxu0 0.0
    %373 = vmatpush1.msra.mxu0 0.0
    %374 = vmatprep.subr.mxu0 0.0
    %375 = vmatpush1.msra.mxu0 0.0
    %376 = vmatprep.subr.mxu0 0.0
    %377 = vmatpush1.msra.mxu0 0.0
    %378 = vmatprep.subr.mxu0 0.0
    %379 = vmatpush1.msra.mxu0 0.0
    %380 = vmatprep.subr.mxu0 0.0
    %381 = vmatpush1.msra.mxu0 0.0
    %382 = vmatprep.subr.mxu0 0.0
    %383 = vmatpush1.msra.mxu0 0.0
    %384 = vmatprep.subr.mxu0 0.0
    %385 = vmatpush1.msra.mxu0 0.0
    %386 = vmatprep.subr.mxu0 0.0
    %387 = vmatpush1.msra.mxu0 0.0
    %388 = vmatprep.subr.mxu0 0.0
    %389 = vmatpush1.msra.mxu0 0.0
    %390 = vmatprep.subr.mxu0 0.0
    %391 = vmatpush1.msra.mxu0 0.0
    %392 = vmatprep.subr.mxu0 0.0
    %393 = vmatpush1.msra.mxu0 0.0
    %394 = vmatprep.subr.mxu0 0.0
    %395 = vmatpush1.msra.mxu0 0.0
    %396 = vmatprep.subr.mxu0 0.0
    %397 = vmatpush1.msra.mxu0 0.0
    %398 = vmatprep.subr.mxu0 0.0
    %399 = vmatpush1.msra.mxu0 0.0
    %400 = vmatprep.subr.mxu0 0.0
    %401 = vmatpush1.msra.mxu0 0.0
    %402 = vmatprep.subr.mxu0 0.0
    %403 = vmatpush1.msra.mxu0 0.0
    %404 = vmatprep.subr.mxu0 0.0
    %405 = vmatpush1.msra.mxu0 0.0
    %406 = vmatprep.mubr.f32.mxu0 0.0
    %407 = vmatmul.mubr.f32.gmra.mrb[0].mxu0 %v295
    %v408 = vpop.f32.mrb[0].mxu0
    %v409 = vadd.f32 0.0, %v408
    %v410 = vpop.f32.mrb[0].mxu0
    %411 = vmatprep.mubr.f32.mxu0 0.0
    %412 = vmatmul.mubr.f32.gmra.mrb[0].mxu0 %v298
    %v413 = vpop.f32.mrb[0].mxu0
    %v414 = vadd.f32 0.0, %v413
    %v415 = vpop.f32.mrb[0].mxu0
    %416 = vmatprep.mubr.f32.mxu0 0.0
    %417 = vmatmul.mubr.f32.gmra.mrb[0].mxu0 %v301
    %v418 = vpop.f32.mrb[0].mxu0
    %v419 = vadd.f32 0.0, %v418
    %v420 = vpop.f32.mrb[0].mxu0
    %421 = vmatprep.mubr.f32.mxu0 0.0
    %422 = vmatmul.mubr.f32.gmra.mrb[0].mxu0 %v304
    %v423 = vpop.f32.mrb[0].mxu0
    %v424 = vadd.f32 0.0, %v423
    %v425 = vpop.f32.mrb[0].mxu0
    %426 = vmatprep.mubr.f32.mxu0 0.0
    %427 = vmatmul.mubr.f32.gmra.mrb[0].mxu0 %v307
    %v428 = vpop.f32.mrb[0].mxu0
    %v429 = vadd.f32 0.0, %v428
    %v430 = vpop.f32.mrb[0].mxu0
    %431 = vmatprep.mubr.f32.mxu0 0.0
    %432 = vmatmul.mubr.f32.gmra.mrb[0].mxu0 %v310
    %v433 = vpop.f32.mrb[0].mxu0
    %v434 = vadd.f32 0.0, %v433
    %v435 = vpop.f32.mrb[0].mxu0
    %436 = vmatprep.mubr.f32.mxu0 0.0
    %437 = vmatmul.mubr.f32.gmra.mrb[0].mxu0 %v313
    %v438 = vpop.f32.mrb[0].mxu0
    %v439 = vadd.f32 0.0, %v438
    %v440 = vpop.f32.mrb[0].mxu0
    %441 = vmatprep.mubr.f32.mxu0 0.0
    %442 = vmatmul.mubr.f32.gmra.mrb[0].mxu0 %v316
    %v443 = vpop.f32.mrb[0].mxu0
    %v444 = vadd.f32 0.0, %v443
    %v445 = vpop.f32.mrb[0].mxu0
    %446 = vmatprep.mubr.f32.mxu0 0.0
    %447 = vmatmul.mubr.f32.gmra.mrb[0].mxu0 %v319
    %v448 = vpop.f32.mrb[0].mxu0
    %v449 = vadd.f32 0.0, %v448
    %v450 = vpop.f32.mrb[0].mxu0
    %451 = vmatprep.mubr.f32.mxu0 0.0
    %452 = vmatmul.mubr.f32.gmra.mrb[0].mxu0 %v322
    %v453 = vpop.f32.mrb[0].mxu0
    %v454 = vadd.f32 0.0, %v453
    %v455 = vpop.f32.mrb[0].mxu0
    %456 = vmatprep.mubr.f32.mxu0 0.0
    %457 = vmatmul.mubr.f32.gmra.mrb[0].mxu0 %v325
    %v458 = vpop.f32.mrb[0].mxu0
    %v459 = vadd.f32 0.0, %v458
    %v460 = vpop.f32.mrb[0].mxu0
    %461 = vmatprep.mubr.f32.mxu0 0.0
    %462 = vmatmul.mubr.f32.gmra.mrb[0].mxu0 %v328
    %v463 = vpop.f32.mrb[0].mxu0
    %v464 = vadd.f32 0.0, %v463
    %v465 = vpop.f32.mrb[0].mxu0
    %466 = vmatprep.mubr.f32.mxu0 0.0
    %467 = vmatmul.mubr.f32.gmra.mrb[0].mxu0 %v331
    %v468 = vpop.f32.mrb[0].mxu0
    %v469 = vadd.f32 0.0, %v468
    %v470 = vpop.f32.mrb[0].mxu0
    %471 = vmatprep.mubr.f32.mxu0 0.0
    %472 = vmatmul.mubr.f32.gmra.mrb[0].mxu0 %v334
    %v473 = vpop.f32.mrb[0].mxu0
    %v474 = vadd.f32 0.0, %v473
    %v475 = vpop.f32.mrb[0].mxu0
    %476 = vmatprep.mubr.f32.mxu0 0.0
    %477 = vmatmul.mubr.f32.gmra.mrb[0].mxu0 %v337
    %v478 = vpop.f32.mrb[0].mxu0
    %v479 = vadd.f32 0.0, %v478
    %v480 = vpop.f32.mrb[0].mxu0
    %481 = vmatprep.mubr.f32.mxu0 0.0
    %482 = vmatmul.mubr.f32.gmra.mrb[0].mxu0 %v340
    %v483 = vpop.f32.mrb[0].mxu0
    %v484 = vadd.f32 0.0, %v483
    %v485 = vpop.f32.mrb[0].mxu0
    %486 = vdwg.mxu0
    %v487 = vmul.f32 %v42, %v98
    %v488 = vmul.f32 %v43, %v100
    %v489 = vmul.f32 %v44, %v102
    %v490 = vmul.f32 %v45, %v104
    %v491 = vmul.f32 %v46, %v106
    %v492 = vmul.f32 %v47, %v108
    %v493 = vmul.f32 %v48, %v110
    %v494 = vmul.f32 %v49, %v112
    %v495 = vmul.f32 %v50, %v114
    %v496 = vmul.f32 %v51, %v116
    %v497 = vmul.f32 %v52, %v118
    %v498 = vmul.f32 %v53, %v120
    %v499 = vmul.f32 %v54, %v122
    %v500 = vmul.f32 %v55, %v124
    %v501 = vmul.f32 %v56, %v126
    %v502 = vmul.f32 %v57, %v128
    %v503 = vmul.f32 %v193, %v245
    %v504 = vmul.f32 %v194, %v247
    %v505 = vmul.f32 %v195, %v249
    %v506 = vmul.f32 %v196, %v251
    %v507 = vmul.f32 %v197, %v253
    %v508 = vmul.f32 %v198, %v255
    %v509 = vmul.f32 %v199, %v257
    %v510 = vmul.f32 %v200, %v259
    %v511 = vmul.f32 %v201, %v261
    %v512 = vmul.f32 %v202, %v263
    %v513 = vmul.f32 %v203, %v265
    %v514 = vmul.f32 %v204, %v267
    %v515 = vmul.f32 %v205, %v269
    %v516 = vmul.f32 %v206, %v271
    %v517 = vmul.f32 %v207, %v273
    %v518 = vmul.f32 %v208, %v275
    %535 = vrot.lane.b32.xlu0 %v98, 1
    %v536 = vpop.permute.xlu0 %535
    %537 = vrot.lane.b32.xlu0 %v100, 1
    %v538 = vpop.permute.xlu0 %537
    %539 = vrot.lane.b32.xlu0 %v102, 1
    %v540 = vpop.permute.xlu0 %539
    %541 = vrot.lane.b32.xlu0 %v104, 1
    %v542 = vpop.permute.xlu0 %541
    %543 = vrot.lane.b32.xlu0 %v106, 1
    %v544 = vpop.permute.xlu0 %543
    %545 = vrot.lane.b32.xlu0 %v108, 1
    %v546 = vpop.permute.xlu0 %545
    %547 = vrot.lane.b32.xlu0 %v110, 1
    %v548 = vpop.permute.xlu0 %547
    %549 = vrot.lane.b32.xlu0 %v112, 1
    %v550 = vpop.permute.xlu0 %549
    %551 = vrot.lane.b32.xlu0 %v114, 1
    %v552 = vpop.permute.xlu0 %551
    %553 = vrot.lane.b32.xlu0 %v116, 1
    %v554 = vpop.permute.xlu0 %553
    %555 = vrot.lane.b32.xlu0 %v118, 1
    %v556 = vpop.permute.xlu0 %555
    %557 = vrot.lane.b32.xlu0 %v120, 1
    %v558 = vpop.permute.xlu0 %557
    %559 = vrot.lane.b32.xlu0 %v122, 1
    %v560 = vpop.permute.xlu0 %559
    %561 = vrot.lane.b32.xlu0 %v124, 1
    %v562 = vpop.permute.xlu0 %561
    %563 = vrot.lane.b32.xlu0 %v126, 1
    %v564 = vpop.permute.xlu0 %563
    %565 = vrot.lane.b32.xlu0 %v128, 1
    %v566 = vpop.permute.xlu0 %565
    %599 = vrot.lane.b32.xlu0 %v503, 2
    %v600 = vpop.permute.xlu0 %599
    %601 = vrot.lane.b32.xlu0 %v504, 2
    %v602 = vpop.permute.xlu0 %601
    %603 = vrot.lane.b32.xlu0 %v505, 2
    %v604 = vpop.permute.xlu0 %603
    %605 = vrot.lane.b32.xlu0 %v506, 2
    %v606 = vpop.permute.xlu0 %605
    %607 = vrot.lane.b32.xlu0 %v507, 2
    %v608 = vpop.permute.xlu0 %607
    %609 = vrot.lane.b32.xlu0 %v508, 2
    %v610 = vpop.permute.xlu0 %609
    %611 = vrot.lane.b32.xlu0 %v509, 2
    %v612 = vpop.permute.xlu0 %611
    %613 = vrot.lane.b32.xlu0 %v510, 2
    %v614 = vpop.permute.xlu0 %613
    %615 = vrot.lane.b32.xlu0 %v511, 2
    %v616 = vpop.permute.xlu0 %615
    %617 = vrot.lane.b32.xlu0 %v512, 2
    %v618 = vpop.permute.xlu0 %617
    %619 = vrot.lane.b32.xlu0 %v513, 2
    %v620 = vpop.permute.xlu0 %619
    %621 = vrot.lane.b32.xlu0 %v514, 2
    %v622 = vpop.permute.xlu0 %621
    %623 = vrot.lane.b32.xlu0 %v515, 2
    %v624 = vpop.permute.xlu0 %623
    %625 = vrot.lane.b32.xlu0 %v516, 2
    %v626 = vpop.permute.xlu0 %625
    %627 = vrot.lane.b32.xlu0 %v517, 2
    %v628 = vpop.permute.xlu0 %627
    %629 = vrot.lane.b32.xlu0 %v518, 2
    %v630 = vpop.permute.xlu0 %629
    %663 = vrot.lane.b32.xlu0 %v245, 3
    %v664 = vpop.permute.xlu0 %663
    %665 = vrot.lane.b32.xlu0 %v247, 3
    %v666 = vpop.permute.xlu0 %665
    %667 = vrot.lane.b32.xlu0 %v249, 3
    %v668 = vpop.permute.xlu0 %667
    %669 = vrot.lane.b32.xlu0 %v251, 3
    %v670 = vpop.permute.xlu0 %669
    %671 = vrot.lane.b32.xlu0 %v253, 3
    %v672 = vpop.permute.xlu0 %671
    %673 = vrot.lane.b32.xlu0 %v255, 3
    %v674 = vpop.permute.xlu0 %673
    %675 = vrot.lane.b32.xlu0 %v257, 3
    %v676 = vpop.permute.xlu0 %675
    %677 = vrot.lane.b32.xlu0 %v259, 3
    %v678 = vpop.permute.xlu0 %677
    %679 = vrot.lane.b32.xlu0 %v261, 3
    %v680 = vpop.permute.xlu0 %679
    %681 = vrot.lane.b32.xlu0 %v263, 3
    %v682 = vpop.permute.xlu0 %681
    %683 = vrot.lane.b32.xlu0 %v265, 3
    %v684 = vpop.permute.xlu0 %683
    %685 = vrot.lane.b32.xlu0 %v267, 3
    %v686 = vpop.permute.xlu0 %685
    %687 = vrot.lane.b32.xlu0 %v269, 3
    %v688 = vpop.permute.xlu0 %687
    %689 = vrot.lane.b32.xlu0 %v271, 3
    %v690 = vpop.permute.xlu0 %689
    %691 = vrot.lane.b32.xlu0 %v273, 3
    %v692 = vpop.permute.xlu0 %691
    %693 = vrot.lane.b32.xlu0 %v275, 3
    %v694 = vpop.permute.xlu0 %693
    %727 = vrot.lane.b32.xlu0 %v409, 4
    %v728 = vpop.permute.xlu0 %727
    %729 = vrot.lane.b32.xlu0 %v414, 4
    %v730 = vpop.permute.xlu0 %729
    %731 = vrot.lane.b32.xlu0 %v419, 4
    %v732 = vpop.permute.xlu0 %731
    %733 = vrot.lane.b32.xlu0 %v424, 4
    %v734 = vpop.permute.xlu0 %733
    %735 = vrot.lane.b32.xlu0 %v429, 4
    %v736 = vpop.permute.xlu0 %735
    %737 = vrot.lane.b32.xlu0 %v434, 4
    %v738 = vpop.permute.xlu0 %737
    %739 = vrot.lane.b32.xlu0 %v439, 4
    %v740 = vpop.permute.xlu0 %739
    %741 = vrot.lane.b32.xlu0 %v444, 4
    %v742 = vpop.permute.xlu0 %741
    %743 = vrot.lane.b32.xlu0 %v449, 4
    %v744 = vpop.permute.xlu0 %743
    %745 = vrot.lane.b32.xlu0 %v454, 4
    %v746 = vpop.permute.xlu0 %745
    %747 = vrot.lane.b32.xlu0 %v459, 4
    %v748 = vpop.permute.xlu0 %747
    %749 = vrot.lane.b32.xlu0 %v464, 4
    %v750 = vpop.permute.xlu0 %749
    %751 = vrot.lane.b32.xlu0 %v469, 4
    %v752 = vpop.permute.xlu0 %751
    %753 = vrot.lane.b32.xlu0 %v474, 4
    %v754 = vpop.permute.xlu0 %753
    %755 = vrot.lane.b32.xlu0 %v479, 4
    %v756 = vpop.permute.xlu0 %755
    %757 = vrot.lane.b32.xlu0 %v484, 4
    %v758 = vpop.permute.xlu0 %757
    %vm775 = vcmask 7168
    %v776 = vsel %vm775, %v487, %v536
    %v777 = vsel %vm775, %v488, %v538
    %v778 = vsel %vm775, %v489, %v540
    %v779 = vsel %vm775, %v490, %v542
    %v780 = vsel %vm775, %v491, %v544
    %v781 = vsel %vm775, %v492, %v546
    %v782 = vsel %vm775, %v493, %v548
    %v783 = vsel %vm775, %v494, %v550
    %v784 = vsel %vm775, %v495, %v552
    %v785 = vsel %vm775, %v496, %v554
    %v786 = vsel %vm775, %v497, %v556
    %v787 = vsel %vm775, %v498, %v558
    %v788 = vsel %vm775, %v499, %v560
    %v789 = vsel %vm775, %v500, %v562
    %v790 = vsel %vm775, %v501, %v564
    %v791 = vsel %vm775, %v502, %v566
    %vm792 = vcmask 15360
    %v793 = vsel %vm792, %v776, %v600
    %v794 = vsel %vm792, %v777, %v602
    %v795 = vsel %vm792, %v778, %v604
    %v796 = vsel %vm792, %v779, %v606
    %v797 = vsel %vm792, %v780, %v608
    %v798 = vsel %vm792, %v781, %v610
    %v799 = vsel %vm792, %v782, %v612
    %v800 = vsel %vm792, %v783, %v614
    %v801 = vsel %vm792, %v784, %v616
    %v802 = vsel %vm792, %v785, %v618
    %v803 = vsel %vm792, %v786, %v620
    %v804 = vsel %vm792, %v787, %v622
    %v805 = vsel %vm792, %v788, %v624
    %v806 = vsel %vm792, %v789, %v626
    %v807 = vsel %vm792, %v790, %v628
    %v808 = vsel %vm792, %v791, %v630
    %vm809 = vcmask 23552
    %v810 = vsel %vm809, %v793, %v664
    %v811 = vsel %vm809, %v794, %v666
    %v812 = vsel %vm809, %v795, %v668
    %v813 = vsel %vm809, %v796, %v670
    %v814 = vsel %vm809, %v797, %v672
    %v815 = vsel %vm809, %v798, %v674
    %v816 = vsel %vm809, %v799, %v676
    %v817 = vsel %vm809, %v800, %v678
    %v818 = vsel %vm809, %v801, %v680
    %v819 = vsel %vm809, %v802, %v682
    %v820 = vsel %vm809, %v803, %v684
    %v821 = vsel %vm809, %v804, %v686
    %v822 = vsel %vm809, %v805, %v688
    %v823 = vsel %vm809, %v806, %v690
    %v824 = vsel %vm809, %v807, %v692
    %v825 = vsel %vm809, %v808, %v694
    %vm826 = vcmask 31744
    %v827 = vsel %vm826, %v810, %v728
    %v828 = vsel %vm826, %v811, %v730
    %v829 = vsel %vm826, %v812, %v732
    %v830 = vsel %vm826, %v813, %v734
    %v831 = vsel %vm826, %v814, %v736
    %v832 = vsel %vm826, %v815, %v738
    %v833 = vsel %vm826, %v816, %v740
    %v834 = vsel %vm826, %v817, %v742
    %v835 = vsel %vm826, %v818, %v744
    %v836 = vsel %vm826, %v819, %v746
    %v837 = vsel %vm826, %v820, %v748
    %v838 = vsel %vm826, %v821, %v750
    %v839 = vsel %vm826, %v822, %v752
    %v840 = vsel %vm826, %v823, %v754
    %v841 = vsel %vm826, %v824, %v756
    %v842 = vsel %vm826, %v825, %v758
    %vm843 = vcmask 39936
    %v844 = vsel %vm843, %v827, 0.0
    %v845 = vsel %vm843, %v828, 0.0
    %v846 = vsel %vm843, %v829, 0.0
    %v847 = vsel %vm843, %v830, 0.0
    %v848 = vsel %vm843, %v831, 0.0
    %v849 = vsel %vm843, %v832, 0.0
    %v850 = vsel %vm843, %v833, 0.0
    %v851 = vsel %vm843, %v834, 0.0
    %v852 = vsel %vm843, %v835, 0.0
    %v853 = vsel %vm843, %v836, 0.0
    %v854 = vsel %vm843, %v837, 0.0
    %v855 = vsel %vm843, %v838, 0.0
    %v856 = vsel %vm843, %v839, 0.0
    %v857 = vsel %vm843, %v840, 0.0
    %v858 = vsel %vm843, %v841, 0.0
    %v859 = vsel %vm843, %v842, 0.0
    %v860 = vld [vmem:[%s1] sm:$0xf]
    %v861 = vld [vmem:[%s1 + $0x4] sm:$0xf]
    %v862 = vunpack.c.l.bf16 %v860
    %v863 = vunpack.c.l.bf16 %v861
    %v864 = vld [vmem:[#allocation2] sm:$0xff]
    %v865 = vld [vmem:[#allocation2 + $0x8] sm:$0xff]
    %866 = vmatprep.subr.mxu0 0.0
    %867 = vmatpush1.msra.mxu0 %v844
    %868 = vmatprep.subr.mxu0 0.0
    %869 = vmatpush1.msra.mxu0 %v845
    %870 = vmatprep.subr.mxu0 0.0
    %871 = vmatpush1.msra.mxu0 %v846
    %872 = vmatprep.subr.mxu0 0.0
    %873 = vmatpush1.msra.mxu0 %v847
    %874 = vmatprep.subr.mxu0 0.0
    %875 = vmatpush1.msra.mxu0 %v848
    %876 = vmatprep.subr.mxu0 0.0
    %877 = vmatpush1.msra.mxu0 %v849
    %878 = vmatprep.subr.mxu0 0.0
    %879 = vmatpush1.msra.mxu0 %v850
    %880 = vmatprep.subr.mxu0 0.0
    %881 = vmatpush1.msra.mxu0 %v851
    %882 = vmatprep.subr.mxu0 0.0
    %883 = vmatpush1.msra.mxu0 %v852
    %884 = vmatprep.subr.mxu0 0.0
    %885 = vmatpush1.msra.mxu0 %v853
    %886 = vmatprep.subr.mxu0 0.0
    %887 = vmatpush1.msra.mxu0 %v854
    %888 = vmatprep.subr.mxu0 0.0
    %889 = vmatpush1.msra.mxu0 %v855
    %890 = vmatprep.subr.mxu0 0.0
    %891 = vmatpush1.msra.mxu0 %v856
    %892 = vmatprep.subr.mxu0 0.0
    %893 = vmatpush1.msra.mxu0 %v857
    %894 = vmatprep.subr.mxu0 0.0
    %895 = vmatpush1.msra.mxu0 %v858
    %896 = vmatprep.subr.mxu0 0.0
    %897 = vmatpush1.msra.mxu0 %v859
    %898 = vmatprep.subr.mxu0 0.0
    %899 = vmatpush1.msra.mxu0 0.0
    %900 = vmatprep.subr.mxu0 0.0
    %901 = vmatpush1.msra.mxu0 0.0
    %902 = vmatprep.subr.mxu0 0.0
    %903 = vmatpush1.msra.mxu0 0.0
    %904 = vmatprep.subr.mxu0 0.0
    %905 = vmatpush1.msra.mxu0 0.0
    %906 = vmatprep.subr.mxu0 0.0
    %907 = vmatpush1.msra.mxu0 0.0
    %908 = vmatprep.subr.mxu0 0.0
    %909 = vmatpush1.msra.mxu0 0.0
    %910 = vmatprep.subr.mxu0 0.0
    %911 = vmatpush1.msra.mxu0 0.0
    %912 = vmatprep.subr.mxu0 0.0
    %913 = vmatpush1.msra.mxu0 0.0
    %914 = vmatprep.subr.mxu0 0.0
    %915 = vmatpush1.msra.mxu0 0.0
    %916 = vmatprep.subr.mxu0 0.0
    %917 = vmatpush1.msra.mxu0 0.0
    %918 = vmatprep.subr.mxu0 0.0
    %919 = vmatpush1.msra.mxu0 0.0
    %920 = vmatprep.subr.mxu0 0.0
    %921 = vmatpush1.msra.mxu0 0.0
    %922 = vmatprep.subr.mxu0 0.0
    %923 = vmatpush1.msra.mxu0 0.0
    %924 = vmatprep.subr.mxu0 0.0
    %925 = vmatpush1.msra.mxu0 0.0
    %926 = vmatprep.subr.mxu0 0.0
    %927 = vmatpush1.msra.mxu0 0.0
    %928 = vmatprep.subr.mxu0 0.0
    %929 = vmatpush1.msra.mxu0 0.0
    %930 = vmatprep.mubr.f32.mxu0 0.0
    %931 = vmatmul.mubr.f32.gmra.mrb[0].mxu0 %v862
    %v932 = vpop.f32.mrb[0].mxu0
    %v933 = vadd.f32 0.0, %v932
    %v934 = vpop.f32.mrb[0].mxu0
    %935 = vmatprep.mubr.f32.mxu0 0.0
    %936 = vmatmul.mubr.f32.gmra.mrb[0].mxu0 %v863
    %v937 = vpop.f32.mrb[0].mxu0
    %v938 = vadd.f32 0.0, %v937
    %v939 = vpop.f32.mrb[0].mxu0
    %940 = vdwg.mxu0
    %v941 = vadd.f32 %v864, %v933
    %v942 = vadd.f32 %v865, %v938
    %943 = vst.msk [vmem:[#allocation2] sm:$0xff] %vm293, %v941
    %944 = vst.msk [vmem:[#allocation2 + $0x8] sm:$0xff] %vm293, %v942
    // Predicated region
    $region42: #{tpu_custom_call.1} parent=1 // pred_check
      %p945 = pneg %p35
    $region43: #{tpu_custom_call.1} parent=1 // pred_check_branch
      %947 = sbr.rel (%p945) target = $region45
    $region44: #{tpu_custom_call.1} parent=1 // pred_region
      %v948 = vld [vmem:[#allocation2] sm:$0xff]
      %v949 = vld [vmem:[#allocation2 + $0x8] sm:$0xff]
      %v950 = vld [vmem:[%s7] sm:$0xff]
      %v951 = vld [vmem:[%s7 + $0x8] sm:$0xff]
      %v952 = vadd.f32 %v948, 1e-10
      %v953 = vadd.f32 %v949, 1e-10
      %v954 = vrcp.pop %v952
      %v955 = vrcp.pop %v953
      %958 = vrot.lane.b32.xlu0 %v954, 127
      %v959 = vpop.permute.xlu0 %958
      %960 = vrot.lane.b32.xlu0 %v955, 127
      %v961 = vpop.permute.xlu0 %960
      %v964 = vmul.f32 %v948, %v959
      %v965 = vmul.f32 %v949, %v961
      %v966 = vmul.f32 %v964, %v950
      %v967 = vmul.f32 %v965, %v951
      %970 = vrot.lane.b32.xlu0 %v950, 2
      %v971 = vpop.permute.xlu0 %970
      %972 = vrot.lane.b32.xlu0 %v951, 2
      %v973 = vpop.permute.xlu0 %972
      %v976 = vmul.f32 %v964, %v971
      %v977 = vmul.f32 %v965, %v973
      %v978 = vld [vmem:[%s0] sm:$0x1]
      %v980 = vlaneseq
      %v981 = vshrl.u32 %v980, 7
      %v982 = vsub.s32 0, %v981
      %v983 = vrot.slane %v978, %v982
      %984 = vrot.lane.b32.xlu0 %v983, 2
      %v985 = vpop.permute.xlu0 %984
      %v987 = vadd.f32 %v948, %v985
      %v988 = vadd.f32 %v949, %v985
      %v989 = vand.u32 2147483647, %v987
      %v990 = vand.u32 2147483647, %v988
      %991 = vrot.lane.b32.xlu0 %v950, 4
      %v992 = vpop.permute.xlu0 %991
      %993 = vrot.lane.b32.xlu0 %v951, 4
      %v994 = vpop.permute.xlu0 %993
      %v997 = vmul.f32 %v989, %v992
      %v998 = vmul.f32 %v990, %v994
      %1001 = vrot.lane.b32.xlu0 %v976, 127
      %v1002 = vpop.permute.xlu0 %1001
      %1003 = vrot.lane.b32.xlu0 %v977, 127
      %v1004 = vpop.permute.xlu0 %1003
      %1009 = vrot.lane.b32.xlu0 %v987, 126
      %v1010 = vpop.permute.xlu0 %1009
      %1011 = vrot.lane.b32.xlu0 %v988, 126
      %v1012 = vpop.permute.xlu0 %1011
      %1017 = vrot.lane.b32.xlu0 %v997, 127
      %v1018 = vpop.permute.xlu0 %1017
      %1019 = vrot.lane.b32.xlu0 %v998, 127
      %v1020 = vpop.permute.xlu0 %1019
      %v1023 = vsel %vm775, %v966, %v1002
      %v1024 = vsel %vm775, %v967, %v1004
      %v1025 = vsel %vm792, %v1023, %v1010
      %v1026 = vsel %vm792, %v1024, %v1012
      %v1027 = vsel %vm809, %v1025, %v1018
      %v1028 = vsel %vm809, %v1026, %v1020
      %v1029 = vsel %vm826, %v1027, 0.0
      %v1030 = vsel %vm826, %v1028, 0.0
      %1031 = vst.msk [vmem:[%s9] sm:$0xff] %vm293, %v1029
      %1032 = vst.msk [vmem:[%s9 + $0x8] sm:$0xff] %vm293, %v1030
      %v1033 = vld [vmem:[%s8] sm:$0xff]
      %v1034 = vld [vmem:[%s8 + $0x8] sm:$0xff]
      %vm1035 = vcmp.gt.f32.partialorder %v1033, 0.0
      %vm1036 = vcmp.gt.f32.partialorder %v1034, 0.0
      %1038 = vset.pattern.permute.xlu0 0
      %1039 = vperm.xlu0 %1038, %v966
      %v1040 = vpop.permute.xlu0 %1039
      %1043 = vset.pattern.permute.xlu0 0
      %1044 = vperm.xlu0 %1043, %v967
      %v1045 = vpop.permute.xlu0 %1044
      %v1047 = vsel %vm1035, %v1040, -1e+30
      %v1048 = vsel %vm1036, %v1045, -1e+30
      %v1049 = vsel %vm792, %v1047, -inf
      %v1050 = vsel %vm792, %v1048, -inf
      %v1051 = vmax.f32 %v1049, %v1050
      %v1052 = vrot.slane %v1051, 4
      %v1053 = vmax.f32 %v1051, %v1052
      %v1054 = vrot.slane %v1053, 2
      %v1055 = vmax.f32 %v1053, %v1054
      %v1056 = vrot.slane %v1055, 1
      %v1057 = vmax.f32 %v1055, %v1056
      %1058 = vset.pattern.permute.xlu0 2
      %1059 = vperm.xlu0 %1058, %v976
      %v1060 = vpop.permute.xlu0 %1059
      %1062 = vset.pattern.permute.xlu0 2
      %1063 = vperm.xlu0 %1062, %v977
      %v1064 = vpop.permute.xlu0 %1063
      %v1066 = vsel %vm1035, %v1060, -1e+30
      %v1067 = vsel %vm1036, %v1064, -1e+30
      %v1068 = vsel %vm792, %v1066, -inf
      %v1069 = vsel %vm792, %v1067, -inf
      %v1070 = vmax.f32 %v1068, %v1069
      %v1071 = vrot.slane %v1070, 4
      %v1072 = vmax.f32 %v1070, %v1071
      %v1073 = vrot.slane %v1072, 2
      %v1074 = vmax.f32 %v1072, %v1073
      %v1075 = vrot.slane %v1074, 1
      %v1076 = vmax.f32 %v1074, %v1075
      %vm1077 = vcmask 1040384
      %v1078 = vsel %vm1077, %v1057, %v1076
      %vm1079 = vcmask 9216
      %1080 = vst.msk [vmem:[#allocation3] sm:$0x3] %vm1079, %v1078
    $region45: #{tpu_custom_call.1} parent=1 // pred_fallthru
      _
    // Predicated region
    $region46: #{tpu_custom_call.1} parent=1 // pred_check
      _
    $region47: #{tpu_custom_call.1} parent=1 // pred_check_branch
      %1082 = sbr.rel (0) target = $region49
    $region48: #{tpu_custom_call.1} parent=1 // pred_region
      _
    $region49: #{tpu_custom_call.1} parent=1 // pred_fallthru
      _
    // Predicated region
    $region50: #{tpu_custom_call.1} parent=1 // pred_check
      _
    $region51: #{tpu_custom_call.1} parent=1 // pred_check_branch
      %1084 = sbr.rel (0) target = $region53
    $region52: #{tpu_custom_call.1} parent=1 // pred_region
      %s1086 = ssub.s32 32, 32
      %1087 = vsyncadd [#allocation4], %s1086
      %s1089 = sshll.u32 [#allocation3], 4
      %s1090 = int_to_ptr.vmem [resolvable:$true] %s1089
      %1092 = dma.vmem_to_hbm [thread:$0]  %s1090, 32, %s10, [#allocation4]
    $region53: #{tpu_custom_call.1} parent=1 // pred_fallthru
      _
    // Predicated region
    $region54: #{tpu_custom_call.1} parent=1 // pred_check
      _
    $region55: #{tpu_custom_call.1} parent=1 // pred_check_branch
      %1094 = sbr.rel (0) target = $region57
    $region56: #{tpu_custom_call.1} parent=1 // pred_region
      _
    $region57: #{tpu_custom_call.1} parent=1 // pred_fallthru
      _
    // Predicated region
    $region58: #{tpu_custom_call.1} parent=1 // pred_check
      _
    $region59: #{tpu_custom_call.1} parent=1 // pred_check_branch
      %1096 = sbr.rel (0) target = $region61
    $region60: #{tpu_custom_call.1} parent=1 // pred_region
      %1097 = dma.done [#allocation4], 32
    $region61: #{tpu_custom_call.1} parent=1 // pred_fallthru
      _
    %1098 = vsyncpa [#allocation4], 1

</llo_original>
